<compile_context>
chip_gen: v7x
topology: tpu7x:2x2x1
jax: 0.10.0
libtpu: 0.0.40
codegen_flags: <defaults>
</compile_context>

<pallas_src>
import functools

import jax
import jax.numpy as jnp
from jax.experimental import pallas as pl
from jax.experimental.pallas import tpu as pltpu


def _tpu_config():
    """Returns (num_core_splits, usable VMEM bytes) for the local device."""
    try:
        kind = jax.devices()[0].device_kind.lower()
    except Exception:
        kind = ""
    if any(s in kind for s in ("v5 lite", "v5e", "v5lite", "v6")):
        cores, vmem = 1, 128 * 1024 * 1024       # v5e / v6e: 1 TC, 128 MiB VMEM
    elif "v2" in kind or "v3" in kind:
        cores, vmem = 2, 16 * 1024 * 1024        # old parts: tiny VMEM, be safe
    else:
        cores, vmem = 2, 64 * 1024 * 1024        # v7x / v4 / v5p: 2 TCs, conservative VMEM
    try:
        vmem = int(pltpu.get_tpu_info().vmem_capacity_bytes)
    except Exception:
        pass
    return cores, vmem


def _lm_loss_kernel(y_ref, logits_ref, loss_ref, cnt_ref,
                    acc_loss, acc_cnt, *, padding_idx, n_rows, tm, steps_per_core):
    """Grid: (core_split, token_tile). Accumulates per-row CE and valid count."""
    j = pl.program_id(1)                              # token-tile axis (reduction)

    @pl.when(j == 0)
    def _():
        acc_loss[...] = jnp.zeros_like(acc_loss)
        acc_cnt[...] = jnp.zeros_like(acc_cnt)

    x = logits_ref[...]                               # (tm, V), caller dtype (bf16 or f32)
    tgt = y_ref[...]                                  # (tm, 1) int32

    # Row-wise logsumexp; max/subtract kept in the input dtype (max exact in
    # bf16, subtract is packed VALU on v6e/v7x); only exp/accumulate in f32.
    m = jnp.max(x, axis=-1, keepdims=True)            # (tm, 1)
    shifted = x - m                                   # (tm, V), input dtype
    sum_exp = jnp.sum(jnp.exp(shifted.astype(jnp.float32)),
                      axis=-1, keepdims=True)         # (tm, 1) f32

    # Target-logit gather: (1, V) iota broadcast against (tm, 1) targets. The
    # one-hot sum has at most one nonzero per row, so it is exact pre-upcast.
    col = jax.lax.broadcasted_iota(jnp.int32, (1, x.shape[-1]), 1)
    onehot = col == tgt                               # (tm, V) bool
    tgt_shift = jnp.sum(jnp.where(onehot, shifted, jnp.zeros_like(shifted)),
                        axis=-1, keepdims=True).astype(jnp.float32)

    # Validity: real (in-bounds) row AND not a padding target. Rows beyond the
    # unpadded token count (partial last tile / clamped over-read tiles) carry
    # garbage logits+targets, but everything above is per-row, so zeroing here
    # keeps them out of the accumulators entirely.
    row0 = (pl.program_id(0) * steps_per_core + j) * tm
    row_idx = row0 + jax.lax.broadcasted_iota(jnp.int32, (tm, 1), 0)
    valid = (tgt != padding_idx) & (row_idx < n_rows)

    per_tok = jnp.where(valid, jnp.log(sum_exp) - tgt_shift, 0.0)

    # Vector accumulators: elementwise add only; reduce once at the end.
    acc_loss[...] += per_tok
    acc_cnt[...] += valid.astype(jnp.float32)

    @pl.when(j == pl.num_programs(1) - 1)
    def _():
        loss_ref[...] = jnp.broadcast_to(jnp.sum(acc_loss[...]), loss_ref.shape)
        cnt_ref[...] = jnp.broadcast_to(jnp.sum(acc_cnt[...]), cnt_ref.shape)


def lm_loss(y_out, lm_out, padding_idx=-1, tm=None, num_core_splits=None):
    """Returns (loss, ppl) matching LM_Loss.forward.

    lm_out may be float32 or bfloat16; HBM traffic follows the caller's dtype.
    """
    B, T, V = lm_out.shape
    N = B * T

    logits = lm_out.reshape(N, V)                     # keep caller dtype (bf16 OK), no copy
    targets = y_out.reshape(N, 1).astype(jnp.int32)   # tiny
    itemsize = jnp.dtype(logits.dtype).itemsize

    auto_cores, vmem_bytes = _tpu_config()
    if num_core_splits is None:
        num_core_splits = auto_cores
    num_core_splits = max(1, int(num_core_splits))

    # VMEM bytes consumed per logit element: double-buffered input tile plus an
    # allowance for (tm, V) intermediates Mosaic may materialize (shifted,
    # f32 exp operand/result, one-hot select).
    bytes_per_elem = 2 * itemsize + (2 * itemsize + 8)

    if tm is None:
        budget = int(vmem_bytes * 0.6)                # generation-aware budget
        tm = (budget // (V * bytes_per_elem)) // 8 * 8
        tm = max(8, min(1024, int(tm)))
    else:
        tm = max(8, (int(tm) // 8) * 8)
    # Don't tile wider than each core's share of rows (avoids silly over-read).
    per_core_rows = ((-(-N // num_core_splits) + 7) // 8) * 8
    tm = max(8, min(tm, per_core_rows))
    # TODO(synk): for very large vocabularies (V >= ~128k) add an inner V-chunk
    # loop with online logsumexp so intermediates stay bounded and tm stays big.

    n_tiles = pl.cdiv(N, tm)
    num_core_splits = max(1, min(num_core_splits, n_tiles))
    steps_per_core = pl.cdiv(n_tiles, num_core_splits)
    last_block = max(n_tiles - 1, 0)

    vmem_limit_bytes = int(min(vmem_bytes,
                               max(64 << 20, tm * V * bytes_per_elem + (16 << 20))))

    def row_map(c, j):
        # Clamp so no block starts past the array end; clamped (duplicate)
        # blocks are fully masked in-kernel via the row-index validity check.
        return (jnp.minimum(c * steps_per_core + j, last_block), 0)

    kernel = functools.partial(
        _lm_loss_kernel, padding_idx=int(padding_idx), n_rows=N, tm=tm,
        steps_per_core=steps_per_core)

    # Per-core partial outputs, lane-dense (1, 8, 128) blocks indexed by the
    # parallel axis -> no cross-core write conflicts.
    loss_parts, cnt_parts = pl.pallas_call(
        kernel,
        out_shape=(jax.ShapeDtypeStruct((num_core_splits, 8, 128), jnp.float32),
                   jax.ShapeDtypeStruct((num_core_splits, 8, 128), jnp.float32)),
        grid_spec=pltpu.PrefetchScalarGridSpec(
            num_scalar_prefetch=0,
            grid=(num_core_splits, steps_per_core),
            in_specs=[
                pl.BlockSpec((tm, 1), row_map),       # targets
                pl.BlockSpec((tm, V), row_map),       # logits
            ],
            out_specs=[
                pl.BlockSpec((1, 8, 128), lambda c, j: (c, 0, 0)),  # partial loss
                pl.BlockSpec((1, 8, 128), lambda c, j: (c, 0, 0)),  # partial count
            ],
            scratch_shapes=[
                pltpu.VMEM((tm, 1), jnp.float32),     # per-row loss accumulator
                pltpu.VMEM((tm, 1), jnp.float32),     # per-row count accumulator
            ],
        ),
        compiler_params=pltpu.CompilerParams(
            dimension_semantics=("parallel", "arbitrary"),
            vmem_limit_bytes=vmem_limit_bytes),
        cost_estimate=pl.CostEstimate(
            flops=int(5 * N * V),
            transcendentals=int(N * V),
            bytes_accessed=int(N * V * itemsize + N * 4)),
    )(targets, logits)

    loss = jnp.sum(loss_parts[:, 0, 0])
    cnt = jnp.sum(cnt_parts[:, 0, 0])
    ppl = jnp.exp(loss / cnt)     # NaN if every token is padding (matches reference)
    return loss, ppl


def _reference(y_out, lm_out, padding_idx=-1):
    """Pure-JAX reference mirroring the PyTorch loop semantics."""
    B, T, V = lm_out.shape
    logits = lm_out.reshape(B * T, V).astype(jnp.float32)
    tgt = y_out.reshape(B * T)
    lse = jax.nn.logsumexp(logits, axis=-1)
    safe_tgt = jnp.where(tgt == padding_idx, 0, tgt)
    tgt_logit = jnp.take_along_axis(logits, safe_tgt[:, None], axis=-1)[:, 0]
    valid = tgt != padding_idx
    per_tok = jnp.where(valid, lse - tgt_logit, 0.0)
    loss = jnp.sum(per_tok)
    cnt = jnp.sum(valid.astype(jnp.float32))
    return loss, jnp.exp(loss / cnt)


def _run_case(key, B, T, V, dtype, padding_idx, rtol, atol, **kw):
    k_logits, k_tgt, k_pad = jax.random.split(key, 3)
    lm_out = jax.random.normal(k_logits, (B, T, V), dtype=jnp.float32).astype(dtype)
    y_out = jax.random.randint(k_tgt, (B, T), 0, V, dtype=jnp.int32)
    pad_mask = jax.random.bernoulli(k_pad, 0.25, (B, T))
    y_out = jnp.where(pad_mask, padding_idx, y_out)

    loss, ppl = lm_loss(y_out, lm_out, padding_idx=padding_idx, **kw)
    jax.block_until_ready((loss, ppl))

    ref_loss, ref_ppl = _reference(y_out, lm_out, padding_idx=padding_idx)
    assert jnp.allclose(loss, ref_loss, rtol=rtol, atol=atol), (loss, ref_loss)
    assert jnp.allclose(ppl, ref_ppl, rtol=rtol, atol=atol), (ppl, ref_ppl)


if __name__ == "__main__":
    padding_idx = -1
    key = jax.random.PRNGKey(0)
    k1, k2, k3, k4 = jax.random.split(key, 4)

    # small canonical case (f32 logits)
    _run_case(k1, B=2, T=8, V=128, dtype=jnp.float32,
              padding_idx=padding_idx, rtol=1e-5, atol=1e-5)
    # shape not divisible by the tile -> exercises the partial-tile mask path
    _run_case(k2, B=3, T=5, V=256, dtype=jnp.float32,
              padding_idx=padding_idx, rtol=1e-5, atol=1e-5)
    # bf16 logits end-to-end (halved HBM traffic), bf16 shifted pass in-kernel
    _run_case(k3, B=2, T=8, V=512, dtype=jnp.bfloat16,
              padding_idx=padding_idx, rtol=5e-2, atol=5e-2)
    # force tiny tiles + 2-way core split to exercise multi-tile accumulation
    # and the clamped (fully out-of-bounds) tile path on any device
    _run_case(k4, B=3, T=7, V=128, dtype=jnp.float32,
              padding_idx=padding_idx, rtol=1e-5, atol=1e-5,
              tm=8, num_core_splits=2)

    print("KERNEL_OK")
</pallas_src>

<mosaic_0001>
module attributes {stable_mosaic.version = 11 : i64} {
  func.func @_lm_loss_kernel(%arg0: i32, %arg1: i32, %arg2: memref<8x1xi32, #tpu.memory_space<vmem>>, %arg3: memref<8x128xf32, #tpu.memory_space<vmem>>, %arg4: memref<1x8x128xf32, #tpu.memory_space<vmem>>, %arg5: memref<1x8x128xf32, #tpu.memory_space<vmem>>, %arg6: memref<8x1xf32, #tpu.memory_space<vmem>>, %arg7: memref<8x1xf32, #tpu.memory_space<vmem>>) attributes {dimension_semantics = [#tpu.dimension_semantics<parallel>, #tpu.dimension_semantics<arbitrary>], iteration_bounds = array<i64: 2, 1>, scalar_prefetch = 0 : i64, scratch_operands = 2 : i64, tpu.core_type = #tpu.core_type<tc>, window_params = [{transform_indices = @transform_0, window_bounds = array<i64: 8, 1>}, {transform_indices = @transform_1, window_bounds = array<i64: 8, 128>}, {transform_indices = @transform_2, window_bounds = array<i64: 1, 8, 128>}, {transform_indices = @transform_3, window_bounds = array<i64: 1, 8, 128>}]} {
    %c0_i32 = arith.constant 0 : i32
    %0 = arith.cmpi eq, %arg1, %c0_i32 : i32
    %1 = arith.extui %0 : i1 to i32
    %c0_i32_0 = arith.constant 0 : i32
    %2 = arith.cmpi ne, %1, %c0_i32_0 : i32
    scf.if %2 {
      %cst_18 = arith.constant 0.000000e+00 : f32
      %46 = vector.broadcast %cst_18 : f32 to vector<8x1xf32>
      %c0_19 = arith.constant 0 : index
      %c0_20 = arith.constant 0 : index
      %47 = vector.load %arg6[%c0_19, %c0_20] : memref<8x1xf32, #tpu.memory_space<vmem>>, vector<8x1xf32>
      tpu.vector_store %arg6[%c0_19, %c0_20], %46 {strides = array<i32>} : memref<8x1xf32, #tpu.memory_space<vmem>>, vector<8x1xf32>,
      %cst_21 = arith.constant 0.000000e+00 : f32
      %48 = vector.broadcast %cst_21 : f32 to vector<8x1xf32>
      %c0_22 = arith.constant 0 : index
      %c0_23 = arith.constant 0 : index
      %49 = vector.load %arg7[%c0_22, %c0_23] : memref<8x1xf32, #tpu.memory_space<vmem>>, vector<8x1xf32>
      tpu.vector_store %arg7[%c0_22, %c0_23], %48 {strides = array<i32>} : memref<8x1xf32, #tpu.memory_space<vmem>>, vector<8x1xf32>,
    } else {
    }
    %c0 = arith.constant 0 : index
    %c0_1 = arith.constant 0 : index
    %3 = vector.load %arg3[%c0, %c0_1] : memref<8x128xf32, #tpu.memory_space<vmem>>, vector<8x128xf32>
    %c0_2 = arith.constant 0 : index
    %c0_3 = arith.constant 0 : index
    %4 = vector.load %arg2[%c0_2, %c0_3] : memref<8x1xi32, #tpu.memory_space<vmem>>, vector<8x1xi32>
    %cst = arith.constant dense<0xFF800000> : vector<8xf32>
    %5 = vector.multi_reduction <maximumf>, %3, %cst [1] : vector<8x128xf32> to vector<8xf32>
    %6 = vector.shape_cast %5 : vector<8xf32> to vector<8x1xf32>
    %7 = vector.broadcast %6 : vector<8x1xf32> to vector<8x128xf32>
    %8 = arith.subf %3, %7 : vector<8x128xf32>
    %9 = math.exp %8 : vector<8x128xf32>
    %cst_4 = arith.constant dense<0.000000e+00> : vector<8xf32>
    %10 = vector.multi_reduction <add>, %9, %cst_4 [1] : vector<8x128xf32> to vector<8xf32>
    %11 = vector.shape_cast %10 : vector<8xf32> to vector<8x1xf32>
    %12 = tpu.iota {dimensions = array<i32: 1>} : vector<1x128xi32>
    %13 = vector.broadcast %12 : vector<1x128xi32> to vector<8x128xi32>
    %14 = vector.broadcast %4 : vector<8x1xi32> to vector<8x128xi32>
    %15 = arith.cmpi eq, %13, %14 : vector<8x128xi32>
    %cst_5 = arith.constant 0.000000e+00 : f32
    %16 = vector.broadcast %cst_5 : f32 to vector<8x128xf32>
    %17 = arith.select %15, %8, %16 : vector<8x128xi1>, vector<8x128xf32>
    %cst_6 = arith.constant dense<0.000000e+00> : vector<8xf32>
    %18 = vector.multi_reduction <add>, %17, %cst_6 [1] : vector<8x128xf32> to vector<8xf32>
    %19 = vector.shape_cast %18 : vector<8xf32> to vector<8x1xf32>
    %c1_i32 = arith.constant 1 : i32
    %20 = arith.muli %arg0, %c1_i32 : i32
    %21 = arith.addi %20, %arg1 : i32
    %c8_i32 = arith.constant 8 : i32
    %22 = arith.muli %21, %c8_i32 : i32
    %23 = tpu.iota {dimensions = array<i32: 0>} : vector<8x1xi32>
    %24 = vector.broadcast %22 : i32 to vector<8x1xi32>
    %25 = arith.addi %24, %23 : vector<8x1xi32>
    %c-1_i32 = arith.constant -1 : i32
    %26 = vector.broadcast %c-1_i32 : i32 to vector<8x1xi32>
    %27 = arith.cmpi ne, %4, %26 : vector<8x1xi32>
    %c16_i32 = arith.constant 16 : i32
    %28 = vector.broadcast %c16_i32 : i32 to vector<8x1xi32>
    %29 = arith.cmpi slt, %25, %28 : vector<8x1xi32>
    %30 = arith.andi %27, %29 : vector<8x1xi1>
    %31 = math.log %11 : vector<8x1xf32>
    %32 = arith.subf %31, %19 : vector<8x1xf32>
    %cst_7 = arith.constant 0.000000e+00 : f32
    %33 = vector.broadcast %cst_7 : f32 to vector<8x1xf32>
    %34 = arith.select %30, %32, %33 : vector<8x1xi1>, vector<8x1xf32>
    %c0_8 = arith.constant 0 : index
    %c0_9 = arith.constant 0 : index
    %35 = vector.load %arg6[%c0_8, %c0_9] : memref<8x1xf32, #tpu.memory_space<vmem>>, vector<8x1xf32>
    %36 = arith.addf %35, %34 : vector<8x1xf32>
    %c0_10 = arith.constant 0 : index
    %c0_11 = arith.constant 0 : index
    %37 = vector.load %arg6[%c0_10, %c0_11] : memref<8x1xf32, #tpu.memory_space<vmem>>, vector<8x1xf32>
    tpu.vector_store %arg6[%c0_10, %c0_11], %36 {strides = array<i32>} : memref<8x1xf32, #tpu.memory_space<vmem>>, vector<8x1xf32>,
    %c0_12 = arith.constant 0 : index
    %c0_13 = arith.constant 0 : index
    %38 = vector.load %arg7[%c0_12, %c0_13] : memref<8x1xf32, #tpu.memory_space<vmem>>, vector<8x1xf32>
    %39 = arith.extui %30 : vector<8x1xi1> to vector<8x1xi32>
    %40 = arith.sitofp %39 : vector<8x1xi32> to vector<8x1xf32>
    %41 = arith.addf %38, %40 : vector<8x1xf32>
    %c0_14 = arith.constant 0 : index
    %c0_15 = arith.constant 0 : index
    %42 = vector.load %arg7[%c0_14, %c0_15] : memref<8x1xf32, #tpu.memory_space<vmem>>, vector<8x1xf32>
    tpu.vector_store %arg7[%c0_14, %c0_15], %41 {strides = array<i32>} : memref<8x1xf32, #tpu.memory_space<vmem>>, vector<8x1xf32>,
    %c0_i32_16 = arith.constant 0 : i32
    %43 = arith.cmpi eq, %arg1, %c0_i32_16 : i32
    %44 = arith.extui %43 : i1 to i32
    %c0_i32_17 = arith.constant 0 : i32
    %45 = arith.cmpi ne, %44, %c0_i32_17 : i32
    scf.if %45 {
      %c0_18 = arith.constant 0 : index
      %c0_19 = arith.constant 0 : index
      %46 = vector.load %arg6[%c0_18, %c0_19] : memref<8x1xf32, #tpu.memory_space<vmem>>, vector<8x1xf32>
      %47 = vector.shape_cast %46 : vector<8x1xf32> to vector<1x8x1xf32>
      %cst_20 = arith.constant dense<0.000000e+00> : vector<1xf32>
      %48 = vector.multi_reduction <add>, %47, %cst_20 [1, 2] : vector<1x8x1xf32> to vector<1xf32>
      %49 = vector.shape_cast %48 : vector<1xf32> to vector<1x1x1xf32>
      %50 = vector.extract %49[0, 0, 0] : f32 from vector<1x1x1xf32>
      %51 = vector.broadcast %50 : f32 to vector<1x8x128xf32>
      %c0_21 = arith.constant 0 : index
      %c0_22 = arith.constant 0 : index
      %c0_23 = arith.constant 0 : index
      %52 = vector.load %arg4[%c0_21, %c0_22, %c0_23] : memref<1x8x128xf32, #tpu.memory_space<vmem>>, vector<1x8x128xf32>
      tpu.vector_store %arg4[%c0_21, %c0_22, %c0_23], %51 {strides = array<i32>} : memref<1x8x128xf32, #tpu.memory_space<vmem>>, vector<1x8x128xf32>,
      %c0_24 = arith.constant 0 : index
      %c0_25 = arith.constant 0 : index
      %53 = vector.load %arg7[%c0_24, %c0_25] : memref<8x1xf32, #tpu.memory_space<vmem>>, vector<8x1xf32>
      %54 = vector.shape_cast %53 : vector<8x1xf32> to vector<1x8x1xf32>
      %cst_26 = arith.constant dense<0.000000e+00> : vector<1xf32>
      %55 = vector.multi_reduction <add>, %54, %cst_26 [1, 2] : vector<1x8x1xf32> to vector<1xf32>
      %56 = vector.shape_cast %55 : vector<1xf32> to vector<1x1x1xf32>
      %57 = vector.extract %56[0, 0, 0] : f32 from vector<1x1x1xf32>
      %58 = vector.broadcast %57 : f32 to vector<1x8x128xf32>
      %c0_27 = arith.constant 0 : index
      %c0_28 = arith.constant 0 : index
      %c0_29 = arith.constant 0 : index
      %59 = vector.load %arg5[%c0_27, %c0_28, %c0_29] : memref<1x8x128xf32, #tpu.memory_space<vmem>>, vector<1x8x128xf32>
      tpu.vector_store %arg5[%c0_27, %c0_28, %c0_29], %58 {strides = array<i32>} : memref<1x8x128xf32, #tpu.memory_space<vmem>>, vector<1x8x128xf32>,
    } else {
    }
    return
  }
  func.func @transform_0(%arg0: i32, %arg1: i32) -> (i32, i32) {
    %c1_i32 = arith.constant 1 : i32
    %0 = arith.muli %arg0, %c1_i32 : i32
    %1 = arith.addi %0, %arg1 : i32
    %c1_i32_0 = arith.constant 1 : i32
    %2 = arith.minsi %1, %c1_i32_0 : i32
    %c0_i32 = arith.constant 0 : i32
    %c0_i32_1 = arith.constant 0 : i32
    return %2, %c0_i32 : i32, i32
  }
  func.func @transform_1(%arg0: i32, %arg1: i32) -> (i32, i32) {
    %c1_i32 = arith.constant 1 : i32
    %0 = arith.muli %arg0, %c1_i32 : i32
    %1 = arith.addi %0, %arg1 : i32
    %c1_i32_0 = arith.constant 1 : i32
    %2 = arith.minsi %1, %c1_i32_0 : i32
    %c0_i32 = arith.constant 0 : i32
    %c0_i32_1 = arith.constant 0 : i32
    return %2, %c0_i32 : i32, i32
  }
  func.func @transform_2(%arg0: i32, %arg1: i32) -> (i32, i32, i32) {
    %c0_i32 = arith.constant 0 : i32
    %c0_i32_0 = arith.constant 0 : i32
    %c0_i32_1 = arith.constant 0 : i32
    return %arg0, %c0_i32, %c0_i32_0 : i32, i32, i32
  }
  func.func @transform_3(%arg0: i32, %arg1: i32) -> (i32, i32, i32) {
    %c0_i32 = arith.constant 0 : i32
    %c0_i32_0 = arith.constant 0 : i32
    %c0_i32_1 = arith.constant 0 : i32
    return %arg0, %c0_i32, %c0_i32_0 : i32, i32, i32
  }
}

</mosaic_0001>

<llo_original>
// kernel: tpu_custom_call.1
$region0: #{tpu_custom_call.1}
  #allocation0 [shape = 'u32[]', space=smem, size = 0x4, offset = 0x4, fixed_abs, tag = 'smem constant byte address 0x4 - core index']
  #allocation1 [shape = 'u32[144,128]{1,0:T(1,128)}', space=vmem, size = 0x12000, scoped, tag = 'internal scratch']
  #allocation2 [shape = 'f32[8,1]{1,0:T(8,128)}', space=vmem, size = 0x1000, scoped, tag = 'scratch operand']
  #allocation3 [shape = 'f32[8,1]{1,0:T(8,128)}', space=vmem, size = 0x1000, scoped, tag = 'scratch operand']
  %s0 = inlined_call_operand.hbm [shape: s32[16,1], index: 0, kind: input, shape index: {}]
  %s1 = inlined_call_operand.hbm [shape: f32[16,128], index: 1, kind: input, shape index: {}]
  %s2 = inlined_call_operand.hbm [shape: f32[2,8,128], index: 2, kind: output, shape index: {0}]
  %s3 = inlined_call_operand.hbm [shape: f32[2,8,128], index: 3, kind: output, shape index: {1}]
  %4 = xla_tuple %s2, %s3
  %s5 = sld [smem:[#allocation0]]
  $region65: #{tpu_custom_call.1} parent=0
    _
  %s7 = ssub.s32 1, %s5
  %s8 = scalar_select 0, %s7, %s5
  $region1: #{tpu_custom_call.1} parent=0
    #allocation4 [shape = 'u8[8192]{0}', space=vmem, size = 0x2000, scoped, tag = 'input window, operand 0']
    #allocation5 [shape = 's32[2]{0}', space=sflag, size = 0x8, scoped, tag = 'scoped memory for tpu_custom_call.1']
    #allocation6 [shape = 's32[2]{0}', space=sflag, size = 0x8, scoped, tag = 'scoped memory for tpu_custom_call.1']
    #allocation7 [shape = 'u8[8192]{0}', space=vmem, size = 0x2000, scoped, tag = 'input window, operand 1']
    #allocation8 [shape = 's32[2]{0}', space=sflag, size = 0x8, scoped, tag = 'scoped memory for tpu_custom_call.1']
    #allocation9 [shape = 'u8[8192]{0}', space=vmem, size = 0x2000, scoped, tag = 'output window, operand 0']
    #allocation10 [shape = 'u8[8192]{0}', space=vmem, size = 0x2000, scoped, tag = 'output window, operand 1']
    #allocation11 [shape = 's32[2]{0}', space=sflag, size = 0x8, scoped, tag = 'scoped memory for tpu_custom_call.1']
    %9 = vsyncpa [#allocation5], 0
    %s10 = scalar_lea.sflag [#allocation5], 1
    %11 = vsyncpa %s10, 0
    %12 = vsyncpa [#allocation8], 0
    %s13 = scalar_lea.sflag [#allocation8], 1
    %14 = vsyncpa %s13, 0
    %15 = vsyncpa [#allocation6], 0
    %s16 = scalar_lea.sflag [#allocation6], 1
    %17 = vsyncpa %s16, 0
    %18 = vsyncpa [#allocation11], 0
    %s19 = scalar_lea.sflag [#allocation11], 1
    %20 = vsyncpa %s19, 0
    loop: start=0, step=1, limit=4
    $region2: #{tpu_custom_call.1} parent=1 // loop_pre_header
      _
    $region3: #{tpu_custom_call.1} parent=1 // loop_header
      %s22 = sphi 0, %s26
      %p23 = scmp.ge.s32.totalorder %s22, 4
      %s29 = sphi 0, %s41
      %s30 = sphi 0, %s37
      %s31 = sphi 0, %s29
      %s32 = sphi 0, %s30
      %s33 = sphi 0, %s31
      %s34 = sphi 0, %s32
      %s50 = sphi 0, %s52
      %s53 = sphi 0, %s50
      %s54 = sphi 0, %s53
      %s70 = sphi 0, %s54
      %s82 = sphi 0, %s84
      %s85 = sphi 0, %s82
      %s86 = sphi 0, %s85
      %s102 = sphi 0, %s86
      %s108 = sphi 0, %s110
      %s111 = sphi 0, %s108
      %s112 = sphi 0, %s111
      %s128 = sphi 0, %s112
      %s134 = sphi 0, %s136
      %s137 = sphi 0, %s134
      %s138 = sphi 0, %s137
      %s154 = sphi 0, %s138
    $region4: #{tpu_custom_call.1} parent=1 // loop_header_branch
      %25 = sbr.rel (%p23) target = $region8
    $region5: #{tpu_custom_call.1} parent=1 // loop_body
      %s27 = ssub.s32 %s22, 1
      %s28 = ssub.s32 %s22, 2
      %s35 = sadd.s32 1, %s30
      %p36 = scmp.ge.s32.totalorder %s35, 1
      %s37 = scalar_select %p36, 0, %s35
      %s38 = sadd.s32 1, %s29
      %s39 = scalar_select %p36, %s38, %s29
      %p40 = scmp.ge.s32.totalorder %s39, 2
      %s41 = scalar_select %p40, 0, %s39
      %s42 = sadd.s32 %s29, %s30
      %p43 = scmp.lt.s32.totalorder %s42, 1
      %s44 = scalar_select %p43, %s42, 1
      %s45 = sadd.s32 %s41, %s37
      %p46 = scmp.lt.s32.totalorder %s45, 1
      %s47 = scalar_select %p46, %s45, 1
      %s48 = ssub.s32 %s44, %s47
      %p49 = scmp.eq.s32.totalorder %s48, 0
      %s51 = sadd.s32 %s50, 1
      %s52 = scalar_select %p49, %s50, %s51
      %p55 = pneg %p49
      %p56 = scmp.eq.s32.totalorder %s22, 1
      %p57 = por %p55, %p56
      %p58 = scmp.ne.s32.totalorder %s50, %s53
      %p59 = scmp.eq.s32.totalorder %s22, 0
      %p60 = por %p58, %p59
      %p61 = scmp.ne.s32.totalorder %s50, %s53
      %p62 = scmp.eq.s32.totalorder %s27, 1
      %p63 = por %p61, %p62
      %p64 = scmp.ne.s32.totalorder %s53, %s54
      %p65 = scmp.eq.s32.totalorder %s27, 0
      %p66 = por %p64, %p65
      %p67 = scmp.ne.s32.totalorder %s53, %s54
      %p68 = scmp.eq.s32.totalorder %s28, 1
      %p69 = por %p67, %p68
      %p71 = scmp.ne.s32.totalorder %s54, %s70
      %p72 = scmp.eq.s32.totalorder %s28, 0
      %p73 = por %p71, %p72
      %s74 = sadd.s32 %s29, %s30
      %p75 = scmp.lt.s32.totalorder %s74, 1
      %s76 = scalar_select %p75, %s74, 1
      %s77 = sadd.s32 %s41, %s37
      %p78 = scmp.lt.s32.totalorder %s77, 1
      %s79 = scalar_select %p78, %s77, 1
      %s80 = ssub.s32 %s76, %s79
      %p81 = scmp.eq.s32.totalorder %s80, 0
      %s83 = sadd.s32 %s82, 1
      %s84 = scalar_select %p81, %s82, %s83
      %p87 = pneg %p81
      %p88 = scmp.eq.s32.totalorder %s22, 1
      %p89 = por %p87, %p88
      %p90 = scmp.ne.s32.totalorder %s82, %s85
      %p91 = scmp.eq.s32.totalorder %s22, 0
      %p92 = por %p90, %p91
      %p93 = scmp.ne.s32.totalorder %s82, %s85
      %p94 = scmp.eq.s32.totalorder %s27, 1
      %p95 = por %p93, %p94
      %p96 = scmp.ne.s32.totalorder %s85, %s86
      %p97 = scmp.eq.s32.totalorder %s27, 0
      %p98 = por %p96, %p97
      %p99 = scmp.ne.s32.totalorder %s85, %s86
      %p100 = scmp.eq.s32.totalorder %s28, 1
      %p101 = por %p99, %p100
      %p103 = scmp.ne.s32.totalorder %s86, %s102
      %p104 = scmp.eq.s32.totalorder %s28, 0
      %p105 = por %p103, %p104
      %s106 = ssub.s32 %s29, %s41
      %p107 = scmp.eq.s32.totalorder %s106, 0
      %s109 = sadd.s32 %s108, 1
      %s110 = scalar_select %p107, %s108, %s109
      %p113 = pneg %p107
      %p114 = scmp.eq.s32.totalorder %s22, 1
      %p115 = por %p113, %p114
      %p116 = scmp.ne.s32.totalorder %s108, %s111
      %p117 = scmp.eq.s32.totalorder %s22, 0
      %p118 = por %p116, %p117
      %p119 = scmp.ne.s32.totalorder %s108, %s111
      %p120 = scmp.eq.s32.totalorder %s27, 1
      %p121 = por %p119, %p120
      %p122 = scmp.ne.s32.totalorder %s111, %s112
      %p123 = scmp.eq.s32.totalorder %s27, 0
      %p124 = por %p122, %p123
      %p125 = scmp.ne.s32.totalorder %s111, %s112
      %p126 = scmp.eq.s32.totalorder %s28, 1
      %p127 = por %p125, %p126
      %p129 = scmp.ne.s32.totalorder %s112, %s128
      %p130 = scmp.eq.s32.totalorder %s28, 0
      %p131 = por %p129, %p130
      %s132 = ssub.s32 %s29, %s41
      %p133 = scmp.eq.s32.totalorder %s132, 0
      %s135 = sadd.s32 %s134, 1
      %s136 = scalar_select %p133, %s134, %s135
      %p139 = pneg %p133
      %p140 = scmp.eq.s32.totalorder %s22, 1
      %p141 = por %p139, %p140
      %p142 = scmp.ne.s32.totalorder %s134, %s137
      %p143 = scmp.eq.s32.totalorder %s22, 0
      %p144 = por %p142, %p143
      %p145 = scmp.ne.s32.totalorder %s134, %s137
      %p146 = scmp.eq.s32.totalorder %s27, 1
      %p147 = por %p145, %p146
      %p148 = scmp.ne.s32.totalorder %s137, %s138
      %p149 = scmp.eq.s32.totalorder %s27, 0
      %p150 = por %p148, %p149
      %p151 = scmp.ne.s32.totalorder %s137, %s138
      %p152 = scmp.eq.s32.totalorder %s28, 1
      %p153 = por %p151, %p152
      %p155 = scmp.ne.s32.totalorder %s138, %s154
      %p156 = scmp.eq.s32.totalorder %s28, 0
      %p157 = por %p155, %p156
      %p158 = scmp.le.s32.totalorder 1, %s22
      %p159 = scmp.lt.s32.totalorder %s22, 3
      %p160 = pnand %p158, %p159
      %p161 = pneg %p160
      // Predicated region
      $region9: #{tpu_custom_call.1} parent=5 // pred_check
        _
      $region10: #{tpu_custom_call.1} parent=5 // pred_check_branch
        %163 = sbr.rel (%p160) target = $region12
      $region11: #{tpu_custom_call.1} parent=5 // pred_region
        %s164 = ssub.s32 %s22, 1
      $region12: #{tpu_custom_call.1} parent=5 // pred_fallthru
        _
      %p165 = scmp.lt.s32.totalorder %s22, 2
      // Predicated region
      $region13: #{tpu_custom_call.1} parent=5 // pred_check
        %p166 = pneg %p165
      $region14: #{tpu_custom_call.1} parent=5 // pred_check_branch
        %168 = sbr.rel (%p166) target = $region16
      $region15: #{tpu_custom_call.1} parent=5 // pred_region
        // Predicated region
        $region17: #{tpu_custom_call.1} parent=15 // pred_check
          %p169 = pneg %p60
        $region18: #{tpu_custom_call.1} parent=15 // pred_check_branch
          %171 = sbr.rel (%p169) target = $region20
        $region19: #{tpu_custom_call.1} parent=15 // pred_region
          %s172 = sand.u32 %s50, 1
          %s173 = scalar_lea.sflag [#allocation5], %s172
          %s174 = sand.u32 %s50, 1
          %s175 = smul.addr %s174, 8
          %s176 = scalar_lea.vmem [#allocation4], %s175
          %s177 = sadd.s32 %s29, %s30
          %p178 = scmp.lt.s32.totalorder %s177, 1
          %s179 = scalar_select %p178, %s177, 1
          %s181 = ssub.s32 128, 128
          %182 = vsyncadd %s173, %s181
          %s183 = smul.addr %s179, 128
          %s184 = scalar_lea.hbm %s0, %s183
          %s186 = sshll.u32 %s176, 4
          %s187 = int_to_ptr.vmem [resolvable:$true] %s186
          %189 = dma.hbm_to_vmem [thread:$0]  %s184, 128, %s187, %s173
        $region20: #{tpu_custom_call.1} parent=15 // pred_fallthru
          _
        // Predicated region
        $region21: #{tpu_custom_call.1} parent=15 // pred_check
          %p190 = pneg %p92
        $region22: #{tpu_custom_call.1} parent=15 // pred_check_branch
          %192 = sbr.rel (%p190) target = $region24
        $region23: #{tpu_custom_call.1} parent=15 // pred_region
          %s193 = sand.u32 %s82, 1
          %s194 = scalar_lea.sflag [#allocation8], %s193
          %s195 = sand.u32 %s82, 1
          %s196 = smul.addr %s195, 8
          %s197 = scalar_lea.vmem [#allocation7], %s196
          %s198 = sadd.s32 %s29, %s30
          %p199 = scmp.lt.s32.totalorder %s198, 1
          %s200 = scalar_select %p199, %s198, 1
          %s202 = ssub.s32 128, 128
          %203 = vsyncadd %s194, %s202
          %s204 = smul.addr %s200, 128
          %s205 = scalar_lea.hbm %s1, %s204
          %s207 = sshll.u32 %s197, 4
          %s208 = int_to_ptr.vmem [resolvable:$true] %s207
          %210 = dma.hbm_to_vmem [thread:$0]  %s205, 128, %s208, %s194
        $region24: #{tpu_custom_call.1} parent=15 // pred_fallthru
          _
      $region16: #{tpu_custom_call.1} parent=5 // pred_fallthru
        _
      %p211 = scmp.le.s32.totalorder 1, %s22
      %p212 = scmp.lt.s32.totalorder %s22, 3
      %p213 = pnand %p211, %p212
      %p214 = pneg %p213
      // Predicated region
      $region25: #{tpu_custom_call.1} parent=5 // pred_check
        _
      $region26: #{tpu_custom_call.1} parent=5 // pred_check_branch
        %216 = sbr.rel (%p213) target = $region28
      $region27: #{tpu_custom_call.1} parent=5 // pred_region
        %s217 = ssub.s32 %s22, 1
        %s218 = sand.u32 %s53, 1
        %s219 = scalar_lea.sflag [#allocation5], %s218
        %s220 = sand.u32 %s53, 1
        %s221 = smul.addr %s220, 8
        %s222 = scalar_lea.vmem [#allocation4], %s221
        // Predicated region
        $region29: #{tpu_custom_call.1} parent=27 // pred_check
          %p223 = pneg %p66
        $region30: #{tpu_custom_call.1} parent=27 // pred_check_branch
          %225 = sbr.rel (%p223) target = $region32
        $region31: #{tpu_custom_call.1} parent=27 // pred_region
          %226 = dma.done %s219, 128
        $region32: #{tpu_custom_call.1} parent=27 // pred_fallthru
          _
        %s227 = sand.u32 %s85, 1
        %s228 = scalar_lea.sflag [#allocation8], %s227
        %s229 = sand.u32 %s85, 1
        %s230 = smul.addr %s229, 8
        %s231 = scalar_lea.vmem [#allocation7], %s230
        // Predicated region
        $region33: #{tpu_custom_call.1} parent=27 // pred_check
          %p232 = pneg %p98
        $region34: #{tpu_custom_call.1} parent=27 // pred_check_branch
          %234 = sbr.rel (%p232) target = $region36
        $region35: #{tpu_custom_call.1} parent=27 // pred_region
          %235 = dma.done %s228, 128
        $region36: #{tpu_custom_call.1} parent=27 // pred_fallthru
          _
        %s236 = sand.u32 %s53, 1
        %s237 = scalar_lea.sflag [#allocation5], %s236
        %s238 = sand.u32 %s53, 1
        %s239 = smul.addr %s238, 8
        %s240 = scalar_lea.vmem [#allocation4], %s239
        %p241 = pneg %p66
        %p242 = pneg %p63
        %s243 = sand.u32 %s85, 1
        %s244 = scalar_lea.sflag [#allocation8], %s243
        %s245 = sand.u32 %s85, 1
        %s246 = smul.addr %s245, 8
        %s247 = scalar_lea.vmem [#allocation7], %s246
        %p248 = pneg %p98
        %p249 = pneg %p95
        %p250 = pneg %p124
        %p251 = pneg %p121
        %s252 = sand.u32 %s111, 1
        %s253 = scalar_lea.sflag [#allocation6], %s252
        %s254 = sand.u32 %s111, 1
        %s255 = smul.addr %s254, 8
        %s256 = scalar_lea.vmem [#allocation9], %s255
        %p257 = pneg %p150
        %p258 = pneg %p147
        %s259 = sand.u32 %s137, 1
        %s260 = scalar_lea.sflag [#allocation11], %s259
        %s261 = sand.u32 %s137, 1
        %s262 = smul.addr %s261, 8
        %s263 = scalar_lea.vmem [#allocation10], %s262
        %s264 = sadd.s32 %s31, %s32
        %p265 = scmp.lt.s32.totalorder %s264, 1
        %s266 = scalar_select %p265, %s264, 1
        %s267 = sadd.s32 %s31, %s32
        %p268 = scmp.lt.s32.totalorder %s267, 1
        %s269 = scalar_select %p268, %s267, 1
        %p270 = scmp.eq.s32.totalorder %s32, 0
        // Predicated region
        $region37: #{tpu_custom_call.1} parent=27 // pred_check
          %p271 = pneg %p270
        $region38: #{tpu_custom_call.1} parent=27 // pred_check_branch
          %273 = sbr.rel (%p271) target = $region40
        $region39: #{tpu_custom_call.1} parent=27 // pred_region
          %vm274 = vcmask 7168
          %275 = vst.msk [vmem:[#allocation2] sm:$0xff] %vm274, 0.0
          %276 = vst.msk [vmem:[#allocation3] sm:$0xff] %vm274, 0.0
        $region40: #{tpu_custom_call.1} parent=27 // pred_fallthru
          _
        %v277 = vld [vmem:[%s231] sm:$0xff]
        %v278 = vld [vmem:[%s222] sm:$0xff]
        %279 = vmax.xlane.f32.xlu0 %v277
        %v280 = vpop.xlane.xlu0 %279
        %v281 = vsub.f32 %v277, %v280
        %v282 = vmul.f32 %v281, 1.442695
        %v283 = vpow.pop %v282
        %284 = vadd.xlane.f32.xlu0 %v283
        %v285 = vpop.xlane.xlu0 %284
        %v286 = vlaneseq
        %v287 = vand.u32 %v286, 127
        %288 = vset.pattern.permute.xlu0 0
        %289 = vperm.xlu0 %288, %v278
        %v290 = vpop.permute.xlu0 %289
        %vm291 = vcmp.eq.s32.totalorder %v287, %v290
        %v292 = vsel %vm291, %v281, 0.0
        %293 = vadd.xlane.f32.xlu0 %v292
        %v294 = vpop.xlane.xlu0 %293
        %s295 = sadd.s32 %s31, %s32
        %s296 = smul.u32 %s295, 8
        %v297 = vlaneseq
        %v298 = vshrl.u32 %v297, 7
        %v299 = vstv %s296
        %v300 = vadd.s32 %v299, %v298
        %vm301 = vcmp.ne.s32.totalorder %v278, 4294967295
        %vm302 = vcmp.lt.s32.totalorder %v300, 16
        %vm303 = vmand %vm301, %vm302
        %v304 = vlog2.pop %v285
        %v305 = vmul.f32 %v304, 0.6931472
        %v306 = vsub.f32 %v305, %v294
        %v307 = vsel %vm303, %v306, 0.0
        %v308 = vld [vmem:[#allocation2] sm:$0xff]
        %v309 = vadd.f32 %v308, %v307
        %vm310 = vcmask 7168
        %311 = vst.msk [vmem:[#allocation2] sm:$0xff] %vm310, %v309
        %v312 = vld [vmem:[#allocation3] sm:$0xff]
        %v313 = vsel %vm303, 1, 0
        %v314 = vcvt.s32.f32 %v313
        %v315 = vadd.f32 %v312, %v314
        %316 = vst.msk [vmem:[#allocation3] sm:$0xff] %vm310, %v315
        // Predicated region
        $region41: #{tpu_custom_call.1} parent=27 // pred_check
          %p317 = pneg %p270
        $region42: #{tpu_custom_call.1} parent=27 // pred_check_branch
          %319 = sbr.rel (%p317) target = $region44
        $region43: #{tpu_custom_call.1} parent=27 // pred_region
          %v320 = vld [vmem:[#allocation2] sm:$0xff]
          %v321 = vsel %vm310, %v320, 0.0
          %322 = vadd.xlane.f32.xlu0 %v321
          %v323 = vpop.xlane.xlu0 %322
          %v324 = vrot.slane %v323, 4
          %v325 = vadd.f32 %v323, %v324
          %v326 = vrot.slane %v325, 2
          %v327 = vadd.f32 %v325, %v326
          %v328 = vrot.slane %v327, 1
          %v329 = vadd.f32 %v327, %v328
          %s330 = vtos %v329
          %v331 = vstv %s330
          %332 = vst [vmem:[%s256] sm:$0xff] %v331
          %v333 = vld [vmem:[#allocation3] sm:$0xff]
          %v334 = vsel %vm310, %v333, 0.0
          %335 = vadd.xlane.f32.xlu0 %v334
          %v336 = vpop.xlane.xlu0 %335
          %v337 = vrot.slane %v336, 4
          %v338 = vadd.f32 %v336, %v337
          %v339 = vrot.slane %v338, 2
          %v340 = vadd.f32 %v338, %v339
          %v341 = vrot.slane %v340, 1
          %v342 = vadd.f32 %v340, %v341
          %s343 = vtos %v342
          %v344 = vstv %s343
          %345 = vst [vmem:[%s263] sm:$0xff] %v344
        $region44: #{tpu_custom_call.1} parent=27 // pred_fallthru
          _
        %s346 = sand.u32 %s111, 1
        %s347 = scalar_lea.sflag [#allocation6], %s346
        %s348 = sand.u32 %s111, 1
        %s349 = smul.addr %s348, 8
        %s350 = scalar_lea.vmem [#allocation9], %s349
        %s351 = sand.u32 %s137, 1
        %s352 = scalar_lea.sflag [#allocation11], %s351
        %s353 = sand.u32 %s137, 1
        %s354 = smul.addr %s353, 8
        %s355 = scalar_lea.vmem [#allocation10], %s354
        // Predicated region
        $region45: #{tpu_custom_call.1} parent=27 // pred_check
          %p356 = pneg %p121
        $region46: #{tpu_custom_call.1} parent=27 // pred_check_branch
          %358 = sbr.rel (%p356) target = $region48
        $region47: #{tpu_custom_call.1} parent=27 // pred_region
          %s360 = ssub.s32 128, 128
          %361 = vsyncadd %s347, %s360
          %s362 = smul.addr %s31, 128
          %s363 = scalar_lea.hbm %s2, %s362
          %s365 = sshll.u32 %s350, 4
          %s366 = int_to_ptr.vmem [resolvable:$true] %s365
          %368 = dma.vmem_to_hbm [thread:$0]  %s366, 128, %s363, %s347
        $region48: #{tpu_custom_call.1} parent=27 // pred_fallthru
          _
        // Predicated region
        $region49: #{tpu_custom_call.1} parent=27 // pred_check
          %p369 = pneg %p147
        $region50: #{tpu_custom_call.1} parent=27 // pred_check_branch
          %371 = sbr.rel (%p369) target = $region52
        $region51: #{tpu_custom_call.1} parent=27 // pred_region
          %s373 = ssub.s32 128, 128
          %374 = vsyncadd %s352, %s373
          %s375 = smul.addr %s31, 128
          %s376 = scalar_lea.hbm %s3, %s375
          %s378 = sshll.u32 %s355, 4
          %s379 = int_to_ptr.vmem [resolvable:$true] %s378
          %381 = dma.vmem_to_hbm [thread:$0]  %s379, 128, %s376, %s352
        $region52: #{tpu_custom_call.1} parent=27 // pred_fallthru
          _
      $region28: #{tpu_custom_call.1} parent=5 // pred_fallthru
        _
      %p382 = scmp.le.s32.totalorder 2, %s22
      // Predicated region
      $region53: #{tpu_custom_call.1} parent=5 // pred_check
        %p383 = pneg %p382
      $region54: #{tpu_custom_call.1} parent=5 // pred_check_branch
        %385 = sbr.rel (%p383) target = $region56
      $region55: #{tpu_custom_call.1} parent=5 // pred_region
        %s386 = ssub.s32 %s22, 2
        // Predicated region
        $region57: #{tpu_custom_call.1} parent=55 // pred_check
          %p387 = pneg %p127
        $region58: #{tpu_custom_call.1} parent=55 // pred_check_branch
          %389 = sbr.rel (%p387) target = $region60
        $region59: #{tpu_custom_call.1} parent=55 // pred_region
          %s390 = sand.u32 %s112, 1
          %s391 = scalar_lea.sflag [#allocation6], %s390
          %s392 = sand.u32 %s112, 1
          %s393 = smul.addr %s392, 8
          %s394 = scalar_lea.vmem [#allocation9], %s393
          %395 = dma.done %s391, 128
        $region60: #{tpu_custom_call.1} parent=55 // pred_fallthru
          _
        // Predicated region
        $region61: #{tpu_custom_call.1} parent=55 // pred_check
          %p396 = pneg %p153
        $region62: #{tpu_custom_call.1} parent=55 // pred_check_branch
          %398 = sbr.rel (%p396) target = $region64
        $region63: #{tpu_custom_call.1} parent=55 // pred_region
          %s399 = sand.u32 %s138, 1
          %s400 = scalar_lea.sflag [#allocation11], %s399
          %s401 = sand.u32 %s138, 1
          %s402 = smul.addr %s401, 8
          %s403 = scalar_lea.vmem [#allocation10], %s402
          %404 = dma.done %s400, 128
        $region64: #{tpu_custom_call.1} parent=55 // pred_fallthru
          _
      $region56: #{tpu_custom_call.1} parent=5 // pred_fallthru
        _
    $region6: #{tpu_custom_call.1} parent=1 // loop_footer
      %s26 = sadd.s32 1, %s22
    $region7: #{tpu_custom_call.1} parent=1 // loop_footer_branch
      %21 = sbr.rel target = $region3
    $region8: #{tpu_custom_call.1} parent=1 // loop_exit
      _
    %405 = vsyncpa [#allocation5], 1
    %s406 = scalar_lea.sflag [#allocation5], 1
    %407 = vsyncpa %s406, 1
    %408 = vsyncpa [#allocation8], 1
    %s409 = scalar_lea.sflag [#allocation8], 1
    %410 = vsyncpa %s409, 1
    %411 = vsyncpa [#allocation6], 1
    %s412 = scalar_lea.sflag [#allocation6], 1
    %413 = vsyncpa %s412, 1
    %414 = vsyncpa [#allocation11], 1
    %s415 = scalar_lea.sflag [#allocation11], 1
    %416 = vsyncpa %s415, 1

</llo_original>
